<compile_context>
chip_gen: v5e
topology: v5e:2x2
jax: 0.10.0
libtpu: 0.0.40
codegen_flags: <defaults>
</compile_context>

<pallas_src>
import functools

import jax
import jax.numpy as jnp
from jax import lax
from jax.experimental import pallas as pl
from jax.experimental.pallas import tpu as pltpu

_LANE = 128
_SUB = 8


def _round_up(x, m):
    return (x + m - 1) // m * m


# --------------------------------------------------------------------------
# VMEM budget / tile selection (generation aware)
# --------------------------------------------------------------------------
def _vmem_budget():
    """Returns (tile working-set budget, scoped vmem_limit_bytes)."""
    phys = 128 * 1024 * 1024
    try:
        info = pltpu.get_tpu_info()
        phys = int(getattr(info, "vmem_capacity_bytes", phys))
    except Exception:
        pass
    if phys <= 64 * 1024 * 1024:            # v7x-class TensorCore (64 MiB VMEM)
        return 22 * 1024 * 1024, 40 * 1024 * 1024
    return 40 * 1024 * 1024, 80 * 1024 * 1024   # v5e / v6e (128 MiB physical)


def _select_tiles(B, D, itemsize, budget):
    """Pick (tm, tn, tk) with tm == tn; prefer tk = padded D (nk == 1)."""
    d128 = _round_up(D, _LANE)
    b8 = _round_up(B, _SUB)

    def max_tk(t):
        # double-buffered im/s tiles + f32 acc + diag blocks + out blocks
        overhead = (4 * t * t
                    + 2 * (t * _LANE + _SUB * t) * 4
                    + 2 * (_SUB * t + t) * 4)
        avail = budget - overhead
        if avail <= 0:
            return 0
        tk = avail // (2 * (t + t) * itemsize)
        return min(d128, (tk // _LANE) * _LANE)

    cands = [b8] if b8 <= 1024 else [1024, 512, 256]
    best = None
    for t in cands:
        tk = max_tk(t)
        if tk < _LANE:
            continue
        bp = _round_up(B, t)
        # padded MXU work * (1 + redundant HBM reads ~ 512/t); penalize nk > 1
        # (im panel then re-read across j, extra grid steps).
        cost = float(bp * bp) * (1.0 + 512.0 / t) * (1.0 if tk == d128 else 1.15)
        if best is None or cost < best[0]:
            best = (cost, t, tk)
    if best is None:
        t = b8 if b8 <= 128 else 128
        return t, t, _LANE
    _, t, tk = best
    return t, t, int(tk)


# --------------------------------------------------------------------------
# Kernels
# --------------------------------------------------------------------------
def _sum_kernel(im_ref, s_ref, d1_ref, d2_ref, out_ref, acc_ref,
                *, margin, n_valid, tm, tn):
    """Sum path (max_violation=False). Grid = (ni, nj, nk)."""
    i = pl.program_id(0)
    j = pl.program_id(1)
    k = pl.program_id(2)

    @pl.when(k == 0)
    def _():
        acc_ref[...] = jnp.zeros_like(acc_ref)

    # scores tile += im_tile @ s_tile.T (trans-B contraction, f32 accumulation).
    acc_ref[...] += lax.dot_general(
        im_ref[...], s_ref[...],
        dimension_numbers=(((1,), (1,)), ((), ())),
        preferred_element_type=jnp.float32,
    )

    @pl.when(k == pl.num_programs(2) - 1)
    def _():
        scores = acc_ref[...]                                    # (tm, tn) f32
        r = i * tm + lax.broadcasted_iota(jnp.int32, (tm, tn), 0)
        c = j * tn + lax.broadcasted_iota(jnp.int32, (tm, tn), 1)
        # Exact eye mask + padding mask (matches the PyTorch masked_fill_).
        valid = jnp.logical_and(r != c,
                                jnp.logical_and(r < n_valid, c < n_valid))
        hinge = (jnp.maximum(scores + (margin - d1_ref[...]), 0.0)
                 + jnp.maximum(scores + (margin - d2_ref[...]), 0.0))
        cost = jnp.where(valid, hinge, 0.0)
        colsum = jnp.sum(cost, axis=0, keepdims=True)            # (1, tn)
        # Lane-dense unmasked store; the 8 sublanes hold identical copies and
        # the wrapper picks one row per i-block.
        out_ref[...] = jnp.broadcast_to(colsum, out_ref.shape)


def _maxviol_kernel(im_ref, s_ref, d1_ref, d2_ref, rmax_ref, cmax_ref, acc_ref,
                    *, margin, n_valid, tm, tn):
    """max_violation=True path. Row-max carried across j; col-max partials
    per (i, j) block are max-reduced in the wrapper (keeps i megacore-parallel)."""
    i = pl.program_id(0)
    j = pl.program_id(1)
    k = pl.program_id(2)

    @pl.when(k == 0)
    def _():
        acc_ref[...] = jnp.zeros_like(acc_ref)

    acc_ref[...] += lax.dot_general(
        im_ref[...], s_ref[...],
        dimension_numbers=(((1,), (1,)), ((), ())),
        preferred_element_type=jnp.float32,
    )

    @pl.when(k == pl.num_programs(2) - 1)
    def _():
        scores = acc_ref[...]
        r = i * tm + lax.broadcasted_iota(jnp.int32, (tm, tn), 0)
        c = j * tn + lax.broadcasted_iota(jnp.int32, (tm, tn), 1)
        valid = jnp.logical_and(r != c,
                                jnp.logical_and(r < n_valid, c < n_valid))
        cost_s = jnp.where(valid,
                           jnp.maximum(scores + (margin - d1_ref[...]), 0.0), 0.0)
        cost_im = jnp.where(valid,
                            jnp.maximum(scores + (margin - d2_ref[...]), 0.0), 0.0)

        blk_rmax = jnp.max(cost_s, axis=1, keepdims=True)        # (tm, 1)

        @pl.when(j == 0)
        def _():
            rmax_ref[...] = blk_rmax

        @pl.when(j > 0)
        def _():
            rmax_ref[...] = jnp.maximum(rmax_ref[...], blk_rmax)

        blk_cmax = jnp.max(cost_im, axis=0, keepdims=True)       # (1, tn)
        cmax_ref[...] = jnp.broadcast_to(blk_cmax, cmax_ref.shape)


# --------------------------------------------------------------------------
# Wrapper
# --------------------------------------------------------------------------
def contrastive_loss1(im, s, *, margin=0.0, max_violation=False,
                      compute_dtype=None, tiles=None):
    """Pallas port of ContrastiveLoss1.forward (dot_sim). Returns {'T': loss}.

    compute_dtype: optional (e.g. jnp.bfloat16) to trade precision for MXU/HBM
    throughput; accumulation stays f32. tiles=(tm, tn, tk) overrides the
    heuristic (tm must equal tn; tn a multiple of 128 when B spans >1 tile).
    """
    assert im.ndim == 2 and s.ndim == 2 and im.shape == s.shape
    B, D = im.shape
    margin = float(margin)

    cdt = jnp.dtype(compute_dtype) if compute_dtype is not None else im.dtype
    itemsize = cdt.itemsize
    budget, vmem_limit = _vmem_budget()

    if tiles is not None:
        tm, tn, tk = tiles
    else:
        tm, tn, tk = _select_tiles(B, D, itemsize, budget)
    assert tm == tn and tm % _SUB == 0 and tk % _LANE == 0

    bp = _round_up(B, tm)
    dp = _round_up(D, tk)
    ni, nj, nk = bp // tm, bp // tn, dp // tk

    # diag[i] = <im_i, s_i>, f32 (tiny O(B*D) side input computed once).
    diag = jnp.sum(im.astype(jnp.float32) * s.astype(jnp.float32), axis=1)

    pad_b, pad_d = bp - B, dp - D
    imp = im.astype(cdt)
    sp = s.astype(cdt)
    if pad_b or pad_d:
        imp = jnp.pad(imp, ((0, pad_b), (0, pad_d)))
        sp = jnp.pad(sp, ((0, pad_b), (0, pad_d)))
    diag_p = jnp.pad(diag, (0, pad_b)) if pad_b else diag
    d1 = diag_p.reshape(bp, 1)      # per-row diag  (cost_s)
    d2 = diag_p.reshape(1, bp)      # per-col diag  (cost_im)

    in_specs = [
        pl.BlockSpec((tm, tk), lambda i, j, k: (i, k)),   # im panel: DMA'd once
                                                          # per i when nk == 1
        pl.BlockSpec((tn, tk), lambda i, j, k: (j, k)),   # s panel
        pl.BlockSpec((tm, 1), lambda i, j, k: (i, 0)),    # diag column (tiny)
        pl.BlockSpec((1, tn), lambda i, j, k: (0, j)),    # diag row    (tiny)
    ]
    scratch = [pltpu.VMEM((tm, tn), jnp.float32)]

    im_reads = 1 if nk == 1 else nj
    cost_est = pl.CostEstimate(
        flops=2 * bp * bp * dp + 8 * bp * bp,
        transcendentals=0,
        bytes_accessed=(im_reads + ni) * bp * dp * itemsize
                       + 2 * bp * 4 + ni * _SUB * bp * 4,
    )

    if not max_violation:
        partials = pl.pallas_call(
            functools.partial(_sum_kernel, margin=margin, n_valid=B,
                              tm=tm, tn=tn),
            out_shape=jax.ShapeDtypeStruct((ni * _SUB, nj * tn), jnp.float32),
            grid_spec=pltpu.PrefetchScalarGridSpec(
                num_scalar_prefetch=0,
                grid=(ni, nj, nk),
                in_specs=in_specs,
                out_specs=pl.BlockSpec((_SUB, tn), lambda i, j, k: (i, j)),
                scratch_shapes=scratch,
            ),
            compiler_params=pltpu.CompilerParams(
                dimension_semantics=("parallel", "parallel", "arbitrary"),
                vmem_limit_bytes=vmem_limit,
            ),
            cost_estimate=cost_est,
        )(imp, sp, d1, d2)
        # Every group of 8 sublanes per i-block holds identical column sums.
        loss = jnp.sum(partials[::_SUB, :])
        return {"T": loss}

    rmax, cmax = pl.pallas_call(
        functools.partial(_maxviol_kernel, margin=margin, n_valid=B,
                          tm=tm, tn=tn),
        out_shape=(jax.ShapeDtypeStruct((bp, 1), jnp.float32),
                   jax.ShapeDtypeStruct((ni * _SUB, nj * tn), jnp.float32)),
        grid_spec=pltpu.PrefetchScalarGridSpec(
            num_scalar_prefetch=0,
            grid=(ni, nj, nk),
            in_specs=in_specs,
            out_specs=[pl.BlockSpec((tm, 1), lambda i, j, k: (i, 0)),
                       pl.BlockSpec((_SUB, tn), lambda i, j, k: (i, j))],
            scratch_shapes=scratch,
        ),
        compiler_params=pltpu.CompilerParams(
            # Row-max is accumulated across j (arbitrary); col-max partials are
            # reduced in the wrapper so i stays megacore-parallel.
            dimension_semantics=("parallel", "arbitrary", "arbitrary"),
            vmem_limit_bytes=vmem_limit,
        ),
        cost_estimate=cost_est,
    )(imp, sp, d1, d2)
    # Padded rows/cols were masked to 0 in-kernel, so they add nothing here.
    loss = jnp.sum(rmax) + jnp.sum(jnp.max(cmax, axis=0))
    return {"T": loss}


# --------------------------------------------------------------------------
# Pure-JAX reference mirroring the PyTorch forward
# --------------------------------------------------------------------------
def _reference(im, s, margin=0.0, max_violation=False):
    scores = jnp.matmul(im.astype(jnp.float32), s.astype(jnp.float32).T,
                        precision=lax.Precision.HIGHEST)
    diag = jnp.diag(scores).reshape(-1, 1)
    cost_s = jnp.maximum(margin + scores - diag, 0.0)
    cost_im = jnp.maximum(margin + scores - diag.T, 0.0)
    eye = jnp.eye(scores.shape[0], dtype=bool)
    cost_s = jnp.where(eye, 0.0, cost_s)
    cost_im = jnp.where(eye, 0.0, cost_im)
    if max_violation:
        return jnp.sum(jnp.max(cost_s, axis=1)) + jnp.sum(jnp.max(cost_im, axis=0))
    return jnp.sum(cost_s) + jnp.sum(cost_im)


def _check(name, got, want, rtol, atol):
    assert bool(jnp.allclose(got, want, rtol=rtol, atol=atol)), (
        f"{name}: got={got} want={want}")


if __name__ == "__main__":
    key = jax.random.PRNGKey(0)
    k0, k1, k2, k3 = jax.random.split(key, 4)

    # Small single-block case (module defaults: margin=0, sum path).
    B, D = 12, 40
    im = jax.random.normal(k0, (B, D), dtype=jnp.float32)
    s = jax.random.normal(k1, (B, D), dtype=jnp.float32)

    out = contrastive_loss1(im, s, margin=0.0, max_violation=False)
    _check("sum_small", jax.block_until_ready(out["T"]),
           _reference(im, s, 0.0, False), rtol=5e-4, atol=1e-2)

    out = contrastive_loss1(im, s, margin=0.1, max_violation=True)
    _check("maxviol_small", jax.block_until_ready(out["T"]),
           _reference(im, s, 0.1, True), rtol=5e-4, atol=1e-2)

    # Unaligned shapes, default (single-block) tiling heuristic.
    B2, D2 = 300, 200
    im2 = jax.random.normal(k2, (B2, D2), dtype=jnp.float32)
    s2 = jax.random.normal(k3, (B2, D2), dtype=jnp.float32)
    out = contrastive_loss1(im2, s2, margin=0.2, max_violation=False)
    _check("sum_default_tiles", jax.block_until_ready(out["T"]),
           _reference(im2, s2, 0.2, False), rtol=1e-3, atol=0.5)

    # Force a multi-block (3, 3, 2) grid at small size to exercise tiling,
    # k-accumulation and the in-kernel eye/padding masks on both paths.
    out = contrastive_loss1(im2, s2, margin=0.2, max_violation=False,
                            tiles=(128, 128, 128))
    _check("sum_tiled", jax.block_until_ready(out["T"]),
           _reference(im2, s2, 0.2, False), rtol=1e-3, atol=0.5)

    out = contrastive_loss1(im2, s2, margin=0.05, max_violation=True,
                            tiles=(128, 128, 128))
    _check("maxviol_tiled", jax.block_until_ready(out["T"]),
           _reference(im2, s2, 0.05, True), rtol=1e-3, atol=0.1)

    print("KERNEL_OK")
</pallas_src>

<mosaic_0001>
module attributes {stable_mosaic.version = 11 : i64} {
  func.func @_sum_kernel(%arg0: i32, %arg1: i32, %arg2: i32, %arg3: memref<16x128xf32, #tpu.memory_space<vmem>>, %arg4: memref<16x128xf32, #tpu.memory_space<vmem>>, %arg5: memref<16x1xf32, #tpu.memory_space<vmem>>, %arg6: memref<1x16xf32, #tpu.memory_space<vmem>>, %arg7: memref<8x16xf32, #tpu.memory_space<vmem>>, %arg8: memref<16x16xf32, #tpu.memory_space<vmem>>) attributes {dimension_semantics = [#tpu.dimension_semantics<parallel>, #tpu.dimension_semantics<parallel>, #tpu.dimension_semantics<arbitrary>], iteration_bounds = array<i64: 1, 1, 1>, scalar_prefetch = 0 : i64, scratch_operands = 1 : i64, tpu.core_type = #tpu.core_type<tc>, window_params = [{transform_indices = @transform_0, window_bounds = array<i64: 16, 128>}, {transform_indices = @transform_1, window_bounds = array<i64: 16, 128>}, {transform_indices = @transform_2, window_bounds = array<i64: 16, 1>}, {transform_indices = @transform_3, window_bounds = array<i64: 1, 16>}, {transform_indices = @transform_4, window_bounds = array<i64: 8, 16>}]} {
    %c0_i32 = arith.constant 0 : i32
    %0 = arith.cmpi eq, %arg2, %c0_i32 : i32
    %1 = arith.extui %0 : i1 to i32
    %c0_i32_0 = arith.constant 0 : i32
    %2 = arith.cmpi ne, %1, %c0_i32_0 : i32
    scf.if %2 {
      %cst_10 = arith.constant 0.000000e+00 : f32
      %12 = vector.broadcast %cst_10 : f32 to vector<16x16xf32>
      %c0_11 = arith.constant 0 : index
      %c0_12 = arith.constant 0 : index
      %13 = vector.load %arg8[%c0_11, %c0_12] : memref<16x16xf32, #tpu.memory_space<vmem>>, vector<16x16xf32>
      tpu.vector_store %arg8[%c0_11, %c0_12], %12 {strides = array<i32>} : memref<16x16xf32, #tpu.memory_space<vmem>>, vector<16x16xf32>,
    } else {
    }
    %c0 = arith.constant 0 : index
    %c0_1 = arith.constant 0 : index
    %3 = vector.load %arg8[%c0, %c0_1] : memref<16x16xf32, #tpu.memory_space<vmem>>, vector<16x16xf32>
    %c0_2 = arith.constant 0 : index
    %c0_3 = arith.constant 0 : index
    %4 = vector.load %arg3[%c0_2, %c0_3] : memref<16x128xf32, #tpu.memory_space<vmem>>, vector<16x128xf32>
    %c0_4 = arith.constant 0 : index
    %c0_5 = arith.constant 0 : index
    %5 = vector.load %arg4[%c0_4, %c0_5] : memref<16x128xf32, #tpu.memory_space<vmem>>, vector<16x128xf32>
    %cst = arith.constant dense<0.000000e+00> : vector<16x16xf32>
    %6 = tpu.matmul %4, %5, %cst {dimension_numbers = #tpu.dot_dimension_numbers<[1], [1], [0], [0], [0, 0, 1, 0], [], []>} : vector<16x128xf32>, vector<16x128xf32>, vector<16x16xf32> -> vector<16x16xf32>
    %7 = arith.addf %3, %6 : vector<16x16xf32>
    %c0_6 = arith.constant 0 : index
    %c0_7 = arith.constant 0 : index
    %8 = vector.load %arg8[%c0_6, %c0_7] : memref<16x16xf32, #tpu.memory_space<vmem>>, vector<16x16xf32>
    tpu.vector_store %arg8[%c0_6, %c0_7], %7 {strides = array<i32>} : memref<16x16xf32, #tpu.memory_space<vmem>>, vector<16x16xf32>,
    %c0_i32_8 = arith.constant 0 : i32
    %9 = arith.cmpi eq, %arg2, %c0_i32_8 : i32
    %10 = arith.extui %9 : i1 to i32
    %c0_i32_9 = arith.constant 0 : i32
    %11 = arith.cmpi ne, %10, %c0_i32_9 : i32
    scf.if %11 {
      %c0_10 = arith.constant 0 : index
      %c0_11 = arith.constant 0 : index
      %12 = vector.load %arg8[%c0_10, %c0_11] : memref<16x16xf32, #tpu.memory_space<vmem>>, vector<16x16xf32>
      %c16_i32 = arith.constant 16 : i32
      %13 = arith.muli %arg0, %c16_i32 : i32
      %14 = tpu.iota {dimensions = array<i32: 0>} : vector<16x16xi32>
      %15 = vector.broadcast %13 : i32 to vector<16x16xi32>
      %16 = arith.addi %15, %14 : vector<16x16xi32>
      %c16_i32_12 = arith.constant 16 : i32
      %17 = arith.muli %arg1, %c16_i32_12 : i32
      %18 = tpu.iota {dimensions = array<i32: 1>} : vector<16x16xi32>
      %19 = vector.broadcast %17 : i32 to vector<16x16xi32>
      %20 = arith.addi %19, %18 : vector<16x16xi32>
      %21 = arith.cmpi ne, %16, %20 : vector<16x16xi32>
      %c12_i32 = arith.constant 12 : i32
      %22 = vector.broadcast %c12_i32 : i32 to vector<16x16xi32>
      %23 = arith.cmpi slt, %16, %22 : vector<16x16xi32>
      %c12_i32_13 = arith.constant 12 : i32
      %24 = vector.broadcast %c12_i32_13 : i32 to vector<16x16xi32>
      %25 = arith.cmpi slt, %20, %24 : vector<16x16xi32>
      %26 = arith.andi %23, %25 : vector<16x16xi1>
      %27 = arith.andi %21, %26 : vector<16x16xi1>
      %c0_14 = arith.constant 0 : index
      %c0_15 = arith.constant 0 : index
      %28 = vector.load %arg5[%c0_14, %c0_15] : memref<16x1xf32, #tpu.memory_space<vmem>>, vector<16x1xf32>
      %cst_16 = arith.constant 0.000000e+00 : f32
      %29 = vector.broadcast %cst_16 : f32 to vector<16x1xf32>
      %30 = arith.subf %29, %28 : vector<16x1xf32>
      %31 = vector.broadcast %30 : vector<16x1xf32> to vector<16x16xf32>
      %32 = arith.addf %12, %31 : vector<16x16xf32>
      %cst_17 = arith.constant 0.000000e+00 : f32
      %33 = vector.broadcast %cst_17 : f32 to vector<16x16xf32>
      %34 = arith.maximumf %32, %33 : vector<16x16xf32>
      %c0_18 = arith.constant 0 : index
      %c0_19 = arith.constant 0 : index
      %35 = vector.load %arg6[%c0_18, %c0_19] : memref<1x16xf32, #tpu.memory_space<vmem>>, vector<1x16xf32>
      %cst_20 = arith.constant 0.000000e+00 : f32
      %36 = vector.broadcast %cst_20 : f32 to vector<1x16xf32>
      %37 = arith.subf %36, %35 : vector<1x16xf32>
      %38 = vector.broadcast %37 : vector<1x16xf32> to vector<16x16xf32>
      %39 = arith.addf %12, %38 : vector<16x16xf32>
      %cst_21 = arith.constant 0.000000e+00 : f32
      %40 = vector.broadcast %cst_21 : f32 to vector<16x16xf32>
      %41 = arith.maximumf %39, %40 : vector<16x16xf32>
      %42 = arith.addf %34, %41 : vector<16x16xf32>
      %cst_22 = arith.constant 0.000000e+00 : f32
      %43 = vector.broadcast %cst_22 : f32 to vector<16x16xf32>
      %44 = arith.select %27, %42, %43 : vector<16x16xi1>, vector<16x16xf32>
      %cst_23 = arith.constant dense<0.000000e+00> : vector<16xf32>
      %45 = vector.multi_reduction <add>, %44, %cst_23 [0] : vector<16x16xf32> to vector<16xf32>
      %46 = vector.shape_cast %45 : vector<16xf32> to vector<1x16xf32>
      %47 = vector.shape_cast %46 : vector<1x16xf32> to vector<1x16xf32>
      %48 = vector.broadcast %47 : vector<1x16xf32> to vector<8x16xf32>
      %c0_24 = arith.constant 0 : index
      %c0_25 = arith.constant 0 : index
      %49 = vector.load %arg7[%c0_24, %c0_25] : memref<8x16xf32, #tpu.memory_space<vmem>>, vector<8x16xf32>
      tpu.vector_store %arg7[%c0_24, %c0_25], %48 {strides = array<i32>} : memref<8x16xf32, #tpu.memory_space<vmem>>, vector<8x16xf32>,
    } else {
    }
    return
  }
  func.func @transform_0(%arg0: i32, %arg1: i32, %arg2: i32) -> (i32, i32) {
    %c0_i32 = arith.constant 0 : i32
    return %arg0, %arg2 : i32, i32
  }
  func.func @transform_1(%arg0: i32, %arg1: i32, %arg2: i32) -> (i32, i32) {
    %c0_i32 = arith.constant 0 : i32
    return %arg1, %arg2 : i32, i32
  }
  func.func @transform_2(%arg0: i32, %arg1: i32, %arg2: i32) -> (i32, i32) {
    %c0_i32 = arith.constant 0 : i32
    %c0_i32_0 = arith.constant 0 : i32
    return %arg0, %c0_i32 : i32, i32
  }
  func.func @transform_3(%arg0: i32, %arg1: i32, %arg2: i32) -> (i32, i32) {
    %c0_i32 = arith.constant 0 : i32
    %c0_i32_0 = arith.constant 0 : i32
    return %c0_i32, %arg1 : i32, i32
  }
  func.func @transform_4(%arg0: i32, %arg1: i32, %arg2: i32) -> (i32, i32) {
    %c0_i32 = arith.constant 0 : i32
    return %arg0, %arg1 : i32, i32
  }
}

</mosaic_0001>

<llo_original>
// kernel: tpu_custom_call.1
$region0: #{tpu_custom_call.1}
  #allocation0 [shape = 'u32[]', space=smem, size = 0x4, offset = 0x4, fixed_abs, tag = 'smem constant byte address 0x4 - core index']
  #allocation1 [shape = 'u32[72,128]{1,0:T(1,128)}', space=vmem, size = 0x9000, scoped, tag = 'internal scratch']
  #allocation2 [shape = 'f32[16,16]{1,0:T(8,128)}', space=vmem, size = 0x2000, scoped, tag = 'scratch operand']
  %s0 = inlined_call_operand.vmem [shape: f32[16,128], index: 0, kind: input, shape index: {}]
  %s1 = inlined_call_operand.hbm [shape: f32[16,128], index: 1, kind: input, shape index: {}]
  %s2 = inlined_call_operand.vmem [shape: f32[16,1], index: 2, kind: input, shape index: {}]
  %s3 = inlined_call_operand.vmem [shape: f32[1,16], index: 3, kind: input, shape index: {}]
  %s4 = inlined_call_operand.hbm [shape: f32[8,16], index: 4, kind: output, shape index: {}]
  %s5 = sld [smem:[#allocation0]]
  $region38: #{tpu_custom_call.1} parent=0
    _
  %s7 = ssub.s32 1, %s5
  %s8 = scalar_select 0, %s7, %s5
  $region1: #{tpu_custom_call.1} parent=0
    #allocation3 [shape = 'u8[8192]{0}', space=vmem, size = 0x2000, scoped, tag = 'input window, operand 1, single buffered']
    #allocation4 [shape = 's32[1]{0}', space=sflag, size = 0x4, scoped, tag = 'scoped memory for tpu_custom_call.1']
    #allocation5 [shape = 's32[1]{0}', space=sflag, size = 0x4, scoped, tag = 'scoped memory for tpu_custom_call.1']
    #allocation6 [shape = 'u8[4096]{0}', space=vmem, size = 0x1000, scoped, tag = 'output window, operand 0, single buffered']
    %9 = vsyncpa [#allocation4], 0
    %10 = vsyncpa [#allocation5], 0
    // Predicated region
    $region2: #{tpu_custom_call.1} parent=1 // pred_check
      _
    $region3: #{tpu_custom_call.1} parent=1 // pred_check_branch
      %12 = sbr.rel (0) target = $region5
    $region4: #{tpu_custom_call.1} parent=1 // pred_region
      _
    $region5: #{tpu_custom_call.1} parent=1 // pred_fallthru
      _
    // Predicated region
    $region6: #{tpu_custom_call.1} parent=1 // pred_check
      _
    $region7: #{tpu_custom_call.1} parent=1 // pred_check_branch
      %14 = sbr.rel (0) target = $region9
    $region8: #{tpu_custom_call.1} parent=1 // pred_region
      %16 = vsyncadd [#allocation4], 0
      %s17 = sshll.u32 %s1, 4
      %s18 = int_to_ptr.hbm [resolvable:$true] %s17
      %s19 = sshll.u32 [#allocation3], 4
      %s20 = int_to_ptr.vmem [resolvable:$true] %s19
      %25 = dma.hbm_to_vmem [thread:$0]  %s18, 256, %s20, [#allocation4], 128, 128, 8
    $region9: #{tpu_custom_call.1} parent=1 // pred_fallthru
      _
    // Predicated region
    $region10: #{tpu_custom_call.1} parent=1 // pred_check
      _
    $region11: #{tpu_custom_call.1} parent=1 // pred_check_branch
      %27 = sbr.rel (0) target = $region13
    $region12: #{tpu_custom_call.1} parent=1 // pred_region
      _
    $region13: #{tpu_custom_call.1} parent=1 // pred_fallthru
      _
    // Predicated region
    $region14: #{tpu_custom_call.1} parent=1 // pred_check
      _
    $region15: #{tpu_custom_call.1} parent=1 // pred_check_branch
      %29 = sbr.rel (0) target = $region17
    $region16: #{tpu_custom_call.1} parent=1 // pred_region
      _
    $region17: #{tpu_custom_call.1} parent=1 // pred_fallthru
      _
    // Predicated region
    $region18: #{tpu_custom_call.1} parent=1 // pred_check
      _
    $region19: #{tpu_custom_call.1} parent=1 // pred_check_branch
      %31 = sbr.rel (0) target = $region21
    $region20: #{tpu_custom_call.1} parent=1 // pred_region
      %33 = dma.done [#allocation4], 256
    $region21: #{tpu_custom_call.1} parent=1 // pred_fallthru
      _
    %p34 = scmp.eq.s32.totalorder 0, 0
    // Predicated region
    $region22: #{tpu_custom_call.1} parent=1 // pred_check
      %p35 = pneg %p34
    $region23: #{tpu_custom_call.1} parent=1 // pred_check_branch
      %37 = sbr.rel (%p35) target = $region25
    $region24: #{tpu_custom_call.1} parent=1 // pred_region
      %vm38 = vcmask 130048
      %39 = vst.msk [vmem:[#allocation2] sm:$0xff] %vm38, 0.0
      %40 = vst.msk [vmem:[#allocation2 + $0x8] sm:$0xff] %vm38, 0.0
    $region25: #{tpu_custom_call.1} parent=1 // pred_fallthru
      _
    %v41 = vld [vmem:[#allocation2] sm:$0xff]
    %v42 = vld [vmem:[#allocation2 + $0x8] sm:$0xff]
    %v43 = vld [vmem:[%s0] sm:$0xff]
    %v44 = vld [vmem:[%s0 + $0x8] sm:$0xff]
    %v45 = vld [vmem:[#allocation3] sm:$0xff]
    %v46 = vld [vmem:[#allocation3 + $0x8] sm:$0xff]
    %47 = vmatpush.xpose.msra.mxu0 0.0
    %48 = vmatpush.xpose.msra.mxu0 0.0
    %49 = vmatpush.xpose.msra.mxu0 0.0
    %50 = vmatpush.xpose.msra.mxu0 0.0
    %51 = vmatpush.xpose.msra.mxu0 0.0
    %52 = vmatpush.xpose.msra.mxu0 0.0
    %53 = vmatpush.xpose.msra.mxu0 0.0
    %54 = vmatpush.xpose.msra.mxu0 0.0
    %55 = vmatpush.xpose.msra.mxu0 0.0
    %56 = vmatpush.xpose.msra.mxu0 0.0
    %57 = vmatpush.xpose.msra.mxu0 0.0
    %58 = vmatpush.xpose.msra.mxu0 0.0
    %59 = vmatpush.xpose.msra.mxu0 0.0
    %60 = vmatpush.xpose.msra.mxu0 0.0
    %61 = vmatpush.xpose.msra.mxu0 %v46
    %62 = vmatpush.xpose.msra.mxu0 %v45
    %63 = vmatmul.f32.gmra.mxu0 %v43
    %v64 = vpop.f32.mrf.mxu0
    %v65 = vadd.f32 0.0, %v64
    %66 = vmatmul.f32.gmra.mxu0 %v44
    %v67 = vpop.f32.mrf.mxu0
    %v68 = vadd.f32 0.0, %v67
    %69 = vdwg.mxu0
    %v70 = vadd.f32 %v41, %v65
    %v71 = vadd.f32 %v42, %v68
    %vm72 = vcmask 130048
    %73 = vst.msk [vmem:[#allocation2] sm:$0xff] %vm72, %v70
    %74 = vst.msk [vmem:[#allocation2 + $0x8] sm:$0xff] %vm72, %v71
    // Predicated region
    $region26: #{tpu_custom_call.1} parent=1 // pred_check
      %p75 = pneg %p34
    $region27: #{tpu_custom_call.1} parent=1 // pred_check_branch
      %77 = sbr.rel (%p75) target = $region29
    $region28: #{tpu_custom_call.1} parent=1 // pred_region
      %v78 = vld [vmem:[#allocation2] sm:$0xff]
      %v79 = vld [vmem:[#allocation2 + $0x8] sm:$0xff]
      %s80 = smul.u32 0, 16
      %v81 = vlaneseq
      %v82 = vshrl.u32 %v81, 7
      %v83 = vadd.s32 %v82, 8
      %v84 = vstv %s80
      %v85 = vadd.s32 %v84, %v82
      %v86 = vadd.s32 %v84, %v83
      %s87 = smul.u32 0, 16
      %v88 = vlaneseq
      %v89 = vand.u32 %v88, 127
      %v90 = vstv %s87
      %v91 = vadd.s32 %v90, %v89
      %vm92 = vcmp.ne.s32.totalorder %v85, %v91
      %vm93 = vcmp.ne.s32.totalorder %v86, %v91
      %vm94 = vcmp.lt.s32.totalorder %v85, 12
      %vm95 = vcmp.lt.s32.totalorder %v86, 12
      %vm96 = vcmp.lt.s32.totalorder %v91, 12
      %vm97 = vmand %vm94, %vm96
      %vm98 = vmand %vm95, %vm96
      %vm99 = vmand %vm92, %vm97
      %vm100 = vmand %vm93, %vm98
      %v101 = vld [vmem:[%s2] sm:$0xff]
      %v102 = vld [vmem:[%s2 + $0x8] sm:$0xff]
      %v103 = vsub.f32 0.0, %v101
      %v104 = vsub.f32 0.0, %v102
      %106 = vset.pattern.permute.xlu0 0
      %107 = vperm.xlu0 %106, %v103
      %v108 = vpop.permute.xlu0 %107
      %111 = vset.pattern.permute.xlu0 0
      %112 = vperm.xlu0 %111, %v104
      %v113 = vpop.permute.xlu0 %112
      %v115 = vadd.f32 %v78, %v108
      %v116 = vadd.f32 %v79, %v113
      %v117 = vmax.f32 %v115, 0.0
      %v118 = vmax.f32 %v116, 0.0
      %v119 = vld [vmem:[%s3] sm:$0x1]
      %v120 = vsub.f32 0.0, %v119
      %v122 = vperm.slane %v120, 0
      %v124 = vadd.f32 %v78, %v122
      %v125 = vadd.f32 %v79, %v122
      %v126 = vmax.f32 %v124, 0.0
      %v127 = vmax.f32 %v125, 0.0
      %v128 = vadd.f32 %v117, %v126
      %v129 = vadd.f32 %v118, %v127
      %v130 = vsel %vm99, %v128, 0.0
      %v131 = vsel %vm100, %v129, 0.0
      %v132 = vsel %vm72, %v130, 0.0
      %v133 = vsel %vm72, %v131, 0.0
      %v134 = vadd.f32 %v132, %v133
      %v135 = vrot.slane %v134, 4
      %v136 = vadd.f32 %v134, %v135
      %v137 = vrot.slane %v136, 2
      %v138 = vadd.f32 %v136, %v137
      %v139 = vrot.slane %v138, 1
      %v140 = vadd.f32 %v138, %v139
      %141 = vst.msk [vmem:[#allocation6] sm:$0xff] %vm72, %v140
    $region29: #{tpu_custom_call.1} parent=1 // pred_fallthru
      _
    // Predicated region
    $region30: #{tpu_custom_call.1} parent=1 // pred_check
      _
    $region31: #{tpu_custom_call.1} parent=1 // pred_check_branch
      %143 = sbr.rel (0) target = $region33
    $region32: #{tpu_custom_call.1} parent=1 // pred_region
      %145 = vsyncadd [#allocation5], 0
      %s147 = sshll.u32 [#allocation6], 4
      %s148 = int_to_ptr.vmem [resolvable:$true] %s147
      %s149 = sshll.u32 %s4, 4
      %s150 = int_to_ptr.hbm [resolvable:$true] %s149
      %152 = dma.vmem_to_hbm [thread:$0]  %s148, 128, %s150, [#allocation5]
    $region33: #{tpu_custom_call.1} parent=1 // pred_fallthru
      _
    // Predicated region
    $region34: #{tpu_custom_call.1} parent=1 // pred_check
      _
    $region35: #{tpu_custom_call.1} parent=1 // pred_check_branch
      %154 = sbr.rel (0) target = $region37
    $region36: #{tpu_custom_call.1} parent=1 // pred_region
      %156 = dma.done [#allocation5], 128
    $region37: #{tpu_custom_call.1} parent=1 // pred_fallthru
      _
    %157 = vsyncpa [#allocation4], 1
    %158 = vsyncpa [#allocation5], 1

</llo_original>
